<compile_context>
chip_gen: v7x
topology: tpu7x:2x2x1
jax: 0.10.0
libtpu: 0.0.40
codegen_flags: <defaults>
</compile_context>

<pallas_src>
import jax
import jax.numpy as jnp
from jax import lax
from jax.experimental import pallas as pl
from jax.experimental.pallas import tpu as pltpu


def _linear_kernel(b_ref, w_ref, x_ref, o_ref):
    """b_ref: SMEM (O,) bias; w_ref: (O, D) resident; x_ref: (TB, D) batch tile;
    o_ref: (O, TB) transposed output tile (batch on the lane axis)."""
    # Contract the feature axis of both operands -> (O, TB). Batch lands on
    # the lane axis so every store is a full-width unmasked vst.
    yt = lax.dot_general(
        w_ref[...], x_ref[...],
        dimension_numbers=(((1,), (1,)), ((), ())),
        preferred_element_type=jnp.float32,
    )
    # Bias add: O is static and tiny (1 for this module) -> unrolled scalar
    # adds straight from SMEM, no (1, O) VMEM tile / lane-1 broadcast needed.
    num_out = o_ref.shape[0]
    for o in range(num_out):
        o_ref[o:o + 1, :] = (yt[o:o + 1, :] + b_ref[o]).astype(o_ref.dtype)


def linear_regression_forward(x, weight, bias, *, block_b=512):
    """Pallas equivalent of LinearRegression.forward.

    Args:
      x:       (B, D) float32
      weight:  (O, D) float32  (PyTorch nn.Linear layout)
      bias:    (O,)   float32
      block_b: target batch-tile rows (rounded to a multiple of 128).
    Returns:
      (B, O) float32
    """
    B, D = x.shape
    O = weight.shape[0]

    # Lane-dense batch tile: a power of two >= 128, at most block_b.
    tb = max(128, min(int(block_b), pl.next_power_of_2(B)))
    b_pad = tb * pl.cdiv(B, tb)
    if b_pad != B:
        x = jnp.pad(x, ((0, b_pad - B), (0, 0)))

    grid = (b_pad // tb,)

    # NOTE: for tiny batches (B ~ a few hundred rows or less) a plain XLA
    # `x @ weight.T + bias` is at least as fast; this kernel targets large B
    # where batch tiling + DMA pipelining have work to hide.
    yt = pl.pallas_call(
        _linear_kernel,
        out_shape=jax.ShapeDtypeStruct((O, b_pad), jnp.float32),
        grid_spec=pltpu.PrefetchScalarGridSpec(
            num_scalar_prefetch=1,  # bias -> SMEM
            grid=grid,
            in_specs=[
                # Weight stays resident in VMEM across all batch tiles.
                pl.BlockSpec((O, D), lambda i, b: (0, 0)),
                # x streamed one batch tile per grid step.
                pl.BlockSpec((tb, D), lambda i, b: (i, 0)),
            ],
            # Transposed output tile: batch (multiple of 128) on the lane axis.
            out_specs=pl.BlockSpec((O, tb), lambda i, b: (0, i)),
        ),
        compiler_params=pltpu.CompilerParams(
            # Batch tiles are independent -> shard across TCs on v7x.
            dimension_semantics=("parallel",),
            # Tiles here are tiny (<< default scoped VMEM on v5e/v6e/v7x);
            # set vmem_limit_bytes explicitly only if D or block_b is scaled up.
        ),
    )(bias, weight, x)

    # Back to (B, O). For O == 1 this is just a reshape (no data movement).
    if O == 1:
        y = yt.reshape(b_pad, 1)
    else:
        y = yt.T
    if b_pad != B:
        y = y[:B]
    return y


def init_params(key, input_dim, output_dim=1):
    """Deterministic init matching the PyTorch module:
    - weight: xavier_uniform_  -> U(-a, a), a = sqrt(6 / (fan_in + fan_out))
    - bias:   nn.Linear default -> U(-1/sqrt(fan_in), 1/sqrt(fan_in))
    """
    kw, kb = jax.random.split(key)
    a = jnp.sqrt(6.0 / (input_dim + output_dim))
    weight = jax.random.uniform(
        kw, (output_dim, input_dim), minval=-a, maxval=a, dtype=jnp.float32
    )
    bb = 1.0 / jnp.sqrt(jnp.float32(input_dim))
    bias = jax.random.uniform(
        kb, (output_dim,), minval=-bb, maxval=bb, dtype=jnp.float32
    )
    return weight, bias


if __name__ == "__main__":
    key = jax.random.PRNGKey(0)
    k_x, k_p = jax.random.split(key)

    # Small shapes consistent with LinearRegression(input_dim=32, output_dim=1).
    # B=300 with a 128-row tile exercises multi-step batch tiling (grid=(3,))
    # plus the pad-and-slice path.
    B, D, O = 300, 32, 1
    x = jax.random.normal(k_x, (B, D), dtype=jnp.float32)
    weight, bias = init_params(k_p, D, O)

    y = linear_regression_forward(x, weight, bias, block_b=128)
    jax.block_until_ready(y)

    # Sanity check against plain-JAX reference.
    y_ref = x @ weight.T + bias
    assert y.shape == (B, O)
    assert jnp.allclose(y, y_ref, atol=1e-5, rtol=1e-5)

    print("KERNEL_OK")
</pallas_src>

<mosaic_0001>
module attributes {stable_mosaic.version = 11 : i64} {
  func.func @_linear_kernel(%arg0: i32, %arg1: memref<1xf32, #tpu.memory_space<smem>>, %arg2: memref<1x32xf32, #tpu.memory_space<vmem>>, %arg3: memref<128x32xf32, #tpu.memory_space<vmem>>, %arg4: memref<1x128xf32, #tpu.memory_space<vmem>>) attributes {dimension_semantics = [#tpu.dimension_semantics<parallel>], iteration_bounds = array<i64: 3>, scalar_prefetch = 1 : i64, scratch_operands = 0 : i64, tpu.core_type = #tpu.core_type<tc>, window_params = [{pipeline_mode = #tpu.pipeline_mode<synchronous>, transform_indices = @transform_0, window_bounds = array<i64: 1, 32>}, {transform_indices = @transform_1, window_bounds = array<i64: 128, 32>}, {transform_indices = @transform_2, window_bounds = array<i64: 1, 128>}]} {
    %c0 = arith.constant 0 : index
    %c0_0 = arith.constant 0 : index
    %0 = vector.load %arg2[%c0, %c0_0] : memref<1x32xf32, #tpu.memory_space<vmem>>, vector<1x32xf32>
    %c0_1 = arith.constant 0 : index
    %c0_2 = arith.constant 0 : index
    %1 = vector.load %arg3[%c0_1, %c0_2] : memref<128x32xf32, #tpu.memory_space<vmem>>, vector<128x32xf32>
    %cst = arith.constant dense<0.000000e+00> : vector<1x128xf32>
    %2 = tpu.matmul %0, %1, %cst {dimension_numbers = #tpu.dot_dimension_numbers<[1], [1], [0], [0], [0, 0, 1, 0], [], []>} : vector<1x32xf32>, vector<128x32xf32>, vector<1x128xf32> -> vector<1x128xf32>
    %c0_3 = arith.constant 0 : index
    %3 = memref.load %arg1[%c0_3] : memref<1xf32, #tpu.memory_space<smem>>
    %4 = vector.broadcast %3 : f32 to vector<1x128xf32>
    %5 = arith.addf %2, %4 : vector<1x128xf32>
    %c0_4 = arith.constant 0 : index
    %c0_5 = arith.constant 0 : index
    %6 = vector.load %arg4[%c0_4, %c0_5] : memref<1x128xf32, #tpu.memory_space<vmem>>, vector<1x128xf32>
    tpu.vector_store %arg4[%c0_4, %c0_5], %5 {strides = array<i32>} : memref<1x128xf32, #tpu.memory_space<vmem>>, vector<1x128xf32>,
    return
  }
  func.func @transform_0(%arg0: i32, %arg1: memref<1xf32, #tpu.memory_space<smem>>) -> (i32, i32) {
    %c0_i32 = arith.constant 0 : i32
    %c0_i32_0 = arith.constant 0 : i32
    %c0_i32_1 = arith.constant 0 : i32
    return %c0_i32, %c0_i32_0 : i32, i32
  }
  func.func @transform_1(%arg0: i32, %arg1: memref<1xf32, #tpu.memory_space<smem>>) -> (i32, i32) {
    %c0_i32 = arith.constant 0 : i32
    %c0_i32_0 = arith.constant 0 : i32
    return %arg0, %c0_i32 : i32, i32
  }
  func.func @transform_2(%arg0: i32, %arg1: memref<1xf32, #tpu.memory_space<smem>>) -> (i32, i32) {
    %c0_i32 = arith.constant 0 : i32
    %c0_i32_0 = arith.constant 0 : i32
    return %c0_i32, %arg0 : i32, i32
  }
}

</mosaic_0001>

<llo_original>
// kernel: tpu_custom_call.1
$region0: #{tpu_custom_call.1}
  #allocation0 [shape = 'u32[]', space=smem, size = 0x4, offset = 0x4, fixed_abs, tag = 'smem constant byte address 0x4 - core index']
  #allocation1 [shape = 'u32[144,128]{1,0:T(1,128)}', space=vmem, size = 0x12000, scoped, tag = 'internal scratch']
  #allocation2 [shape = 's32[1]{0}', space=sflag, size = 0x4, scoped, tag = 'scoped memory for tpu_custom_call.1']
  #allocation3 [shape = 'f32[1]{0:T(128)S(6)}', space=smem, size = 0x200, scoped, tag = 'prefetched SMEM operand 0']
  %s0 = inlined_call_operand.<no memory space> [shape: f32[1], index: 0, kind: input, shape index: {}]
  %s1 = inlined_call_operand.vmem [shape: f32[1,32], index: 1, kind: input, shape index: {}]
  %s2 = inlined_call_operand.vmem [shape: f32[384,32], index: 2, kind: input, shape index: {}]
  %s3 = inlined_call_operand.hbm [shape: f32[1,384], index: 3, kind: output, shape index: {}]
  %s4 = sld [smem:[#allocation0]]
  $region41: #{tpu_custom_call.1} parent=0
    _
  %s6 = ssub.s32 1, %s4
  %s7 = scalar_select 0, %s6, %s4
  %8 = sst [smem:[#allocation3]] %s0
  $region1: #{tpu_custom_call.1} parent=0
    #allocation4 [shape = 'u8[1024]{0}', space=vmem, size = 0x400, scoped, tag = 'output window, operand 0']
    #allocation5 [shape = 's32[2]{0}', space=sflag, size = 0x8, scoped, tag = 'scoped memory for tpu_custom_call.1']
    %9 = vsyncpa [#allocation5], 0
    %s10 = scalar_lea.sflag [#allocation5], 1
    %11 = vsyncpa %s10, 0
    loop: start=0, step=1, limit=5
    $region2: #{tpu_custom_call.1} parent=1 // loop_pre_header
      _
    $region3: #{tpu_custom_call.1} parent=1 // loop_header
      %s13 = sphi 0, %s17
      %p14 = scmp.ge.s32.totalorder %s13, 5
      %s21 = sphi 0, %s21
      %s23 = sphi 0, %s21
      %s24 = sphi 0, %s23
      %s38 = sphi 0, %s24
      %s44 = sphi 0, %s46
      %s47 = sphi 0, %s44
      %s48 = sphi 0, %s47
      %s64 = sphi 0, %s48
      %s70 = sphi 0, %s72
      %s73 = sphi 0, %s70
      %s74 = sphi 0, %s73
      %s90 = sphi 0, %s74
    $region4: #{tpu_custom_call.1} parent=1 // loop_header_branch
      %16 = sbr.rel (%p14) target = $region8
    $region5: #{tpu_custom_call.1} parent=1 // loop_body
      %s18 = ssub.s32 %s13, 1
      %s19 = ssub.s32 %s13, 2
      %s20 = sadd.s32 %s13, 1
      %s22 = sadd.s32 %s21, 1
      %p25 = scmp.eq.s32.totalorder %s13, 2
      %p26 = scmp.ne.s32.totalorder %s21, %s23
      %p27 = scmp.eq.s32.totalorder %s13, 0
      %p28 = por %p26, %p27
      %p29 = scmp.ne.s32.totalorder %s21, %s23
      %p30 = scmp.eq.s32.totalorder %s18, 2
      %p31 = por %p29, %p30
      %p32 = scmp.ne.s32.totalorder %s23, %s24
      %p33 = scmp.eq.s32.totalorder %s18, 0
      %p34 = por %p32, %p33
      %p35 = scmp.ne.s32.totalorder %s23, %s24
      %p36 = scmp.eq.s32.totalorder %s19, 2
      %p37 = por %p35, %p36
      %p39 = scmp.ne.s32.totalorder %s24, %s38
      %p40 = scmp.eq.s32.totalorder %s19, 0
      %p41 = por %p39, %p40
      %s42 = ssub.s32 %s13, %s20
      %p43 = scmp.eq.s32.totalorder %s42, 0
      %s45 = sadd.s32 %s44, 1
      %s46 = scalar_select %p43, %s44, %s45
      %p49 = pneg %p43
      %p50 = scmp.eq.s32.totalorder %s13, 2
      %p51 = por %p49, %p50
      %p52 = scmp.ne.s32.totalorder %s44, %s47
      %p53 = scmp.eq.s32.totalorder %s13, 0
      %p54 = por %p52, %p53
      %p55 = scmp.ne.s32.totalorder %s44, %s47
      %p56 = scmp.eq.s32.totalorder %s18, 2
      %p57 = por %p55, %p56
      %p58 = scmp.ne.s32.totalorder %s47, %s48
      %p59 = scmp.eq.s32.totalorder %s18, 0
      %p60 = por %p58, %p59
      %p61 = scmp.ne.s32.totalorder %s47, %s48
      %p62 = scmp.eq.s32.totalorder %s19, 2
      %p63 = por %p61, %p62
      %p65 = scmp.ne.s32.totalorder %s48, %s64
      %p66 = scmp.eq.s32.totalorder %s19, 0
      %p67 = por %p65, %p66
      %s68 = ssub.s32 %s13, %s20
      %p69 = scmp.eq.s32.totalorder %s68, 0
      %s71 = sadd.s32 %s70, 1
      %s72 = scalar_select %p69, %s70, %s71
      %p75 = pneg %p69
      %p76 = scmp.eq.s32.totalorder %s13, 2
      %p77 = por %p75, %p76
      %p78 = scmp.ne.s32.totalorder %s70, %s73
      %p79 = scmp.eq.s32.totalorder %s13, 0
      %p80 = por %p78, %p79
      %p81 = scmp.ne.s32.totalorder %s70, %s73
      %p82 = scmp.eq.s32.totalorder %s18, 2
      %p83 = por %p81, %p82
      %p84 = scmp.ne.s32.totalorder %s73, %s74
      %p85 = scmp.eq.s32.totalorder %s18, 0
      %p86 = por %p84, %p85
      %p87 = scmp.ne.s32.totalorder %s73, %s74
      %p88 = scmp.eq.s32.totalorder %s19, 2
      %p89 = por %p87, %p88
      %p91 = scmp.ne.s32.totalorder %s74, %s90
      %p92 = scmp.eq.s32.totalorder %s19, 0
      %p93 = por %p91, %p92
      %p94 = scmp.le.s32.totalorder 1, %s13
      %p95 = scmp.lt.s32.totalorder %s13, 4
      %p96 = pnand %p94, %p95
      %p97 = pneg %p96
      // Predicated region
      $region9: #{tpu_custom_call.1} parent=5 // pred_check
        _
      $region10: #{tpu_custom_call.1} parent=5 // pred_check_branch
        %99 = sbr.rel (%p96) target = $region12
      $region11: #{tpu_custom_call.1} parent=5 // pred_region
        %s100 = ssub.s32 %s13, 1
        // Predicated region
        $region13: #{tpu_custom_call.1} parent=11 // pred_check
          %p101 = pneg %p34
        $region14: #{tpu_custom_call.1} parent=11 // pred_check_branch
          %103 = sbr.rel (%p101) target = $region16
        $region15: #{tpu_custom_call.1} parent=11 // pred_region
          _
        $region16: #{tpu_custom_call.1} parent=11 // pred_fallthru
          _
      $region12: #{tpu_custom_call.1} parent=5 // pred_fallthru
        _
      %p104 = scmp.lt.s32.totalorder %s13, 3
      // Predicated region
      $region17: #{tpu_custom_call.1} parent=5 // pred_check
        %p105 = pneg %p104
      $region18: #{tpu_custom_call.1} parent=5 // pred_check_branch
        %107 = sbr.rel (%p105) target = $region20
      $region19: #{tpu_custom_call.1} parent=5 // pred_region
        // Predicated region
        $region21: #{tpu_custom_call.1} parent=19 // pred_check
          %p108 = pneg %p54
        $region22: #{tpu_custom_call.1} parent=19 // pred_check_branch
          %110 = sbr.rel (%p108) target = $region24
        $region23: #{tpu_custom_call.1} parent=19 // pred_region
          %s111 = smul.u32 16, %s13
          %p112 = scmp.lt.s32.totalorder %s111, 47
          %s113 = scalar_select %p112, %s111, 47
          %s114 = smul.addr %s113, 8
          %s115 = scalar_lea.vmem %s2, %s114
          %s116 = smul.u32 16, %s13
        $region24: #{tpu_custom_call.1} parent=19 // pred_fallthru
          _
      $region20: #{tpu_custom_call.1} parent=5 // pred_fallthru
        _
      %p117 = scmp.le.s32.totalorder 1, %s13
      %p118 = scmp.lt.s32.totalorder %s13, 4
      %p119 = pnand %p117, %p118
      %p120 = pneg %p119
      // Predicated region
      $region25: #{tpu_custom_call.1} parent=5 // pred_check
        _
      $region26: #{tpu_custom_call.1} parent=5 // pred_check_branch
        %122 = sbr.rel (%p119) target = $region28
      $region27: #{tpu_custom_call.1} parent=5 // pred_region
        %s123 = ssub.s32 %s13, 1
        %p124 = pneg %p34
        %p125 = pneg %p31
        %s126 = smul.u32 16, %s18
        %p127 = scmp.lt.s32.totalorder %s126, 47
        %s128 = scalar_select %p127, %s126, 47
        %s129 = smul.addr %s128, 8
        %s130 = scalar_lea.vmem %s2, %s129
        %p131 = pneg %p60
        %p132 = pneg %p57
        %p133 = pneg %p86
        %p134 = pneg %p83
        %s135 = sand.u32 %s73, 1
        %s136 = scalar_lea.sflag [#allocation5], %s135
        %s137 = sand.u32 %s73, 1
        %s138 = scalar_lea.vmem [#allocation4], %s137
        %s139 = smul.u32 16, %s18
        %p140 = scmp.lt.s32.totalorder %s139, 47
        %s141 = scalar_select %p140, %s139, 47
        %s142 = smul.addr %s141, 8
        %s143 = scalar_lea.vmem %s2, %s142
        %s144 = smul.u32 16, %s18
        %v145 = vld [vmem:[%s1] sm:$0x1]
        %v146 = vld [vmem:[%s143] sm:$0xff]
        %v147 = vld [vmem:[%s143 + $0x8] sm:$0xff]
        %v148 = vld [vmem:[%s143 + $0x10] sm:$0xff]
        %v149 = vld [vmem:[%s143 + $0x18] sm:$0xff]
        %v150 = vld [vmem:[%s143 + $0x20] sm:$0xff]
        %v151 = vld [vmem:[%s143 + $0x28] sm:$0xff]
        %v152 = vld [vmem:[%s143 + $0x30] sm:$0xff]
        %v153 = vld [vmem:[%s143 + $0x38] sm:$0xff]
        %v154 = vld [vmem:[%s143 + $0x40] sm:$0xff]
        %v155 = vld [vmem:[%s143 + $0x48] sm:$0xff]
        %v156 = vld [vmem:[%s143 + $0x50] sm:$0xff]
        %v157 = vld [vmem:[%s143 + $0x58] sm:$0xff]
        %v158 = vld [vmem:[%s143 + $0x60] sm:$0xff]
        %v159 = vld [vmem:[%s143 + $0x68] sm:$0xff]
        %v160 = vld [vmem:[%s143 + $0x70] sm:$0xff]
        %v161 = vld [vmem:[%s143 + $0x78] sm:$0xff]
        %s162 = sld [smem:[#allocation3]]
        %v163 = vstv %s162
        %vm164 = vcmask 261120
        %v166 = vsel %vm164, %v145, 0
        %v169 = vsel %vm164, %v146, 0
        %v172 = vsel %vm164, %v147, 0
        %v175 = vsel %vm164, %v148, 0
        %v178 = vsel %vm164, %v149, 0
        %v181 = vsel %vm164, %v150, 0
        %v184 = vsel %vm164, %v151, 0
        %v187 = vsel %vm164, %v152, 0
        %v190 = vsel %vm164, %v153, 0
        %v193 = vsel %vm164, %v154, 0
        %v196 = vsel %vm164, %v155, 0
        %v199 = vsel %vm164, %v156, 0
        %v202 = vsel %vm164, %v157, 0
        %v205 = vsel %vm164, %v158, 0
        %v208 = vsel %vm164, %v159, 0
        %v211 = vsel %vm164, %v160, 0
        %v214 = vsel %vm164, %v161, 0
        %216 = vmatprep.subr.mxu0 0.0
        %217 = vmatpush1.xpose.msra.mxu0 %v169
        %218 = vmatprep.subr.mxu0 0.0
        %219 = vmatpush1.xpose.msra.mxu0 %v172
        %220 = vmatprep.subr.mxu0 0.0
        %221 = vmatpush1.xpose.msra.mxu0 %v175
        %222 = vmatprep.subr.mxu0 0.0
        %223 = vmatpush1.xpose.msra.mxu0 %v178
        %224 = vmatprep.subr.mxu0 0.0
        %225 = vmatpush1.xpose.msra.mxu0 %v181
        %226 = vmatprep.subr.mxu0 0.0
        %227 = vmatpush1.xpose.msra.mxu0 %v184
        %228 = vmatprep.subr.mxu0 0.0
        %229 = vmatpush1.xpose.msra.mxu0 %v187
        %230 = vmatprep.subr.mxu0 0.0
        %231 = vmatpush1.xpose.msra.mxu0 %v190
        %232 = vmatprep.subr.mxu0 0.0
        %233 = vmatpush1.xpose.msra.mxu0 %v193
        %234 = vmatprep.subr.mxu0 0.0
        %235 = vmatpush1.xpose.msra.mxu0 %v196
        %236 = vmatprep.subr.mxu0 0.0
        %237 = vmatpush1.xpose.msra.mxu0 %v199
        %238 = vmatprep.subr.mxu0 0.0
        %239 = vmatpush1.xpose.msra.mxu0 %v202
        %240 = vmatprep.subr.mxu0 0.0
        %241 = vmatpush1.xpose.msra.mxu0 %v205
        %242 = vmatprep.subr.mxu0 0.0
        %243 = vmatpush1.xpose.msra.mxu0 %v208
        %244 = vmatprep.subr.mxu0 0.0
        %245 = vmatpush1.xpose.msra.mxu0 %v211
        %246 = vmatprep.subr.mxu0 0.0
        %247 = vmatpush1.xpose.msra.mxu0 %v214
        %248 = vmatprep.subr.mxu0 0.0
        %249 = vmatpush1.xpose.msra.mxu0 0.0
        %250 = vmatprep.subr.mxu0 0.0
        %251 = vmatpush1.xpose.msra.mxu0 0.0
        %252 = vmatprep.subr.mxu0 0.0
        %253 = vmatpush1.xpose.msra.mxu0 0.0
        %254 = vmatprep.subr.mxu0 0.0
        %255 = vmatpush1.xpose.msra.mxu0 0.0
        %256 = vmatprep.subr.mxu0 0.0
        %257 = vmatpush1.xpose.msra.mxu0 0.0
        %258 = vmatprep.subr.mxu0 0.0
        %259 = vmatpush1.xpose.msra.mxu0 0.0
        %260 = vmatprep.subr.mxu0 0.0
        %261 = vmatpush1.xpose.msra.mxu0 0.0
        %262 = vmatprep.subr.mxu0 0.0
        %263 = vmatpush1.xpose.msra.mxu0 0.0
        %264 = vmatprep.subr.mxu0 0.0
        %265 = vmatpush1.xpose.msra.mxu0 0.0
        %266 = vmatprep.subr.mxu0 0.0
        %267 = vmatpush1.xpose.msra.mxu0 0.0
        %268 = vmatprep.subr.mxu0 0.0
        %269 = vmatpush1.xpose.msra.mxu0 0.0
        %270 = vmatprep.subr.mxu0 0.0
        %271 = vmatpush1.xpose.msra.mxu0 0.0
        %272 = vmatprep.subr.mxu0 0.0
        %273 = vmatpush1.xpose.msra.mxu0 0.0
        %274 = vmatprep.subr.mxu0 0.0
        %275 = vmatpush1.xpose.msra.mxu0 0.0
        %276 = vmatprep.subr.mxu0 0.0
        %277 = vmatpush1.xpose.msra.mxu0 0.0
        %278 = vmatprep.subr.mxu0 0.0
        %279 = vmatpush1.xpose.msra.mxu0 0.0
        %280 = vmatprep.mubr.f32.mxu0 0.0
        %281 = vmatmul.mubr.f32.gmra.mrb[0].mxu0 %v166
        %v282 = vpop.f32.mrb[0].mxu0
        %v283 = vadd.f32 %v163, %v282
        %v284 = vpop.f32.mrb[0].mxu0
        %285 = vdwg.mxu0
        %286 = vst [vmem:[%s138] sm:$0x1] %v283
        %s287 = sand.u32 %s73, 1
        %s288 = scalar_lea.sflag [#allocation5], %s287
        %s289 = sand.u32 %s73, 1
        %s290 = scalar_lea.vmem [#allocation4], %s289
        // Predicated region
        $region29: #{tpu_custom_call.1} parent=27 // pred_check
          %p291 = pneg %p83
        $region30: #{tpu_custom_call.1} parent=27 // pred_check_branch
          %293 = sbr.rel (%p291) target = $region32
        $region31: #{tpu_custom_call.1} parent=27 // pred_region
          %s295 = ssub.s32 16, 16
          %296 = vsyncadd %s288, %s295
          %s297 = smul.addr %s18, 16
          %s298 = scalar_lea.hbm %s3, %s297
          %s300 = sshll.u32 %s290, 4
          %s301 = int_to_ptr.vmem [resolvable:$true] %s300
          %303 = dma.vmem_to_hbm [thread:$0]  %s301, 16, %s298, %s288
        $region32: #{tpu_custom_call.1} parent=27 // pred_fallthru
          _
      $region28: #{tpu_custom_call.1} parent=5 // pred_fallthru
        _
      %p304 = scmp.le.s32.totalorder 2, %s13
      // Predicated region
      $region33: #{tpu_custom_call.1} parent=5 // pred_check
        %p305 = pneg %p304
      $region34: #{tpu_custom_call.1} parent=5 // pred_check_branch
        %307 = sbr.rel (%p305) target = $region36
      $region35: #{tpu_custom_call.1} parent=5 // pred_region
        %s308 = ssub.s32 %s13, 2
        // Predicated region
        $region37: #{tpu_custom_call.1} parent=35 // pred_check
          %p309 = pneg %p89
        $region38: #{tpu_custom_call.1} parent=35 // pred_check_branch
          %311 = sbr.rel (%p309) target = $region40
        $region39: #{tpu_custom_call.1} parent=35 // pred_region
          %s312 = sand.u32 %s74, 1
          %s313 = scalar_lea.sflag [#allocation5], %s312
          %s314 = sand.u32 %s74, 1
          %s315 = scalar_lea.vmem [#allocation4], %s314
          %316 = dma.done %s313, 16
        $region40: #{tpu_custom_call.1} parent=35 // pred_fallthru
          _
      $region36: #{tpu_custom_call.1} parent=5 // pred_fallthru
        _
    $region6: #{tpu_custom_call.1} parent=1 // loop_footer
      %s17 = sadd.s32 1, %s13
    $region7: #{tpu_custom_call.1} parent=1 // loop_footer_branch
      %12 = sbr.rel target = $region3
    $region8: #{tpu_custom_call.1} parent=1 // loop_exit
      _
    %317 = vsyncpa [#allocation5], 1
    %s318 = scalar_lea.sflag [#allocation5], 1
    %319 = vsyncpa %s318, 1

</llo_original>
